<compile_context>
chip_gen: v6e
topology: v6e:2x2x1
jax: 0.10.0
libtpu: 0.0.40
codegen_flags: <defaults>
</compile_context>

<pallas_src>
import math

import jax
import jax.numpy as jnp
from jax.experimental import pallas as pl
from jax.experimental.pallas import tpu as pltpu  # noqa: F401  (TPU backend)


def _log_gaussian_density_kernel(ans_t_ref, m_iv_ref, inv_var_ref, bias_ref, out_ref):
    ans_t = ans_t_ref[...]                                   # (D, Npad)
    # (K, D) @ (D, Npad) on the MXU, f32 accumulation.
    lin = jnp.dot(m_iv_ref[...], ans_t,
                  preferred_element_type=jnp.float32)        # (K, Npad)
    quad = jnp.dot(inv_var_ref[...], ans_t * ans_t,
                   preferred_element_type=jnp.float32)       # (K, Npad)
    out_ref[...] = lin - 0.5 * quad + bias_ref[...]          # bias (K,1) broadcasts


class LogGaussianDensity:
    """JAX/Pallas port of the PyTorch LogGaussianDensity module."""

    def __init__(self, weight, mean, var):
        # weight: (K,), mean: (K, D), var: (K, D)
        self.weight = jnp.asarray(weight, dtype=jnp.float32)
        self.mean = jnp.asarray(mean, dtype=jnp.float32)
        self.var = jnp.asarray(var, dtype=jnp.float32)

        K, D = self.mean.shape
        # Precomputed, ans-independent terms (kills the per-call log and divide).
        inv_var = 1.0 / self.var                                           # (K, D)
        self.inv_var = inv_var
        self.m_iv = self.mean * inv_var                                    # (K, D)
        log_norm = -0.5 * jnp.sum(jnp.log(2.0 * math.pi * self.var), axis=1)   # (K,)
        quad_const = -0.5 * jnp.sum(self.mean * self.mean * inv_var, axis=1)   # (K,)
        self.bias = (self.weight + log_norm + quad_const).reshape(K, 1)    # (K, 1)

    def _run_kernel(self, ans_2d):
        """ans_2d: (N, D) independent queries -> (K, N) log-densities."""
        K, D = self.mean.shape
        N = ans_2d.shape[0]
        n_pad = 128 * pl.cdiv(N, 128)          # lane-dense output width

        # (D, Npad): D on sublanes, padded query axis on lanes.
        ans_t = jnp.zeros((D, n_pad), dtype=jnp.float32)
        ans_t = ans_t.at[:, :N].set(ans_2d.T)

        flops = 2 * (2 * K * D * n_pad) + 3 * K * n_pad
        bytes_accessed = 4 * (D * n_pad + 2 * K * D + K + K * n_pad)

        out = pl.pallas_call(
            _log_gaussian_density_kernel,
            out_shape=jax.ShapeDtypeStruct((K, n_pad), jnp.float32),
            in_specs=[
                pl.BlockSpec((D, n_pad), lambda: (0, 0)),
                pl.BlockSpec((K, D), lambda: (0, 0)),
                pl.BlockSpec((K, D), lambda: (0, 0)),
                pl.BlockSpec((K, 1), lambda: (0, 0)),
            ],
            out_specs=pl.BlockSpec((K, n_pad), lambda: (0, 0)),
            cost_estimate=pl.CostEstimate(
                flops=flops, transcendentals=0, bytes_accessed=bytes_accessed),
        )(ans_t, self.m_iv, self.inv_var, self.bias)

        return out[:, :N]                      # (K, N)

    def __call__(self, ans):
        """ans: (D,), (1, D) -> (K,);  (N, D) with N > 1 -> (N, K) (one row per query)."""
        D = self.mean.shape[1]
        ans = jnp.asarray(ans, dtype=jnp.float32)
        single = (ans.ndim == 1) or (ans.shape[0] == 1)
        ans_2d = ans.reshape(-1, D)

        out_kn = self._run_kernel(ans_2d)      # (K, N)
        if single:
            return out_kn[:, 0]                # (K,) — matches the PyTorch module
        return out_kn.T                        # (N, K)

    def get_means(self):
        return self.mean


def _reference(ans_row, weight, mean, var):
    a = -0.5 * jnp.sum(jnp.log(2.0 * math.pi * var), axis=1)
    b = -0.5 * jnp.sum((ans_row - mean) ** 2 / var, axis=1)
    return a + b + weight


if __name__ == "__main__":
    K, D = 8, 32  # K mixture components, D feature dims

    key = jax.random.PRNGKey(0)
    k_w, k_m, k_v, k_a, k_b = jax.random.split(key, 5)

    # Deterministic synthetic "buffers" (module registers these, no checkpoint).
    logits = jax.random.normal(k_w, (K,), dtype=jnp.float32)
    weight = jax.nn.log_softmax(logits)                          # log mixture weights (K,)
    mean = jax.random.normal(k_m, (K, D), dtype=jnp.float32)     # (K, D)
    var = jax.nn.softplus(jax.random.normal(k_v, (K, D), dtype=jnp.float32)) + 0.1  # >0

    module = LogGaussianDensity(weight, mean, var)

    # Single query (original module semantics): (1, D) -> (K,)
    ans = jax.random.normal(k_a, (1, D), dtype=jnp.float32)
    out = jax.block_until_ready(module(ans))
    ref = _reference(ans, weight, mean, var)
    assert out.shape == (K,)
    assert jnp.allclose(out, ref, rtol=1e-4, atol=1e-3), (out, ref)

    # Batched queries: (N, D) -> (N, K), each row an independent query.
    N = 4
    ans_b = jax.random.normal(k_b, (N, D), dtype=jnp.float32)
    out_b = jax.block_until_ready(module(ans_b))
    ref_b = jnp.stack([_reference(ans_b[i:i + 1], weight, mean, var) for i in range(N)])
    assert out_b.shape == (N, K)
    assert jnp.allclose(out_b, ref_b, rtol=1e-4, atol=1e-3), (out_b, ref_b)

    print("KERNEL_OK")
</pallas_src>

<mosaic_0001>
module attributes {stable_mosaic.version = 11 : i64} {
  func.func @_log_gaussian_density_kernel(%arg0: memref<32x128xf32, #tpu.memory_space<vmem>>, %arg1: memref<8x32xf32, #tpu.memory_space<vmem>>, %arg2: memref<8x32xf32, #tpu.memory_space<vmem>>, %arg3: memref<8x1xf32, #tpu.memory_space<vmem>>, %arg4: memref<8x128xf32, #tpu.memory_space<vmem>>) attributes {dimension_semantics = [], scalar_prefetch = 0 : i64, scratch_operands = 0 : i64, tpu.core_type = #tpu.core_type<tc>} {
    %c0 = arith.constant 0 : index
    %c0_0 = arith.constant 0 : index
    %0 = vector.load %arg0[%c0, %c0_0] : memref<32x128xf32, #tpu.memory_space<vmem>>, vector<32x128xf32>
    %c0_1 = arith.constant 0 : index
    %c0_2 = arith.constant 0 : index
    %1 = vector.load %arg1[%c0_1, %c0_2] : memref<8x32xf32, #tpu.memory_space<vmem>>, vector<8x32xf32>
    %cst = arith.constant dense<0.000000e+00> : vector<8x128xf32>
    %2 = tpu.matmul %1, %0, %cst {dimension_numbers = #tpu.dot_dimension_numbers<[1], [0], [0], [1], [0, 0, 1, 1], [], []>} : vector<8x32xf32>, vector<32x128xf32>, vector<8x128xf32> -> vector<8x128xf32>
    %c0_3 = arith.constant 0 : index
    %c0_4 = arith.constant 0 : index
    %3 = vector.load %arg2[%c0_3, %c0_4] : memref<8x32xf32, #tpu.memory_space<vmem>>, vector<8x32xf32>
    %4 = arith.mulf %0, %0 : vector<32x128xf32>
    %cst_5 = arith.constant dense<0.000000e+00> : vector<8x128xf32>
    %5 = tpu.matmul %3, %4, %cst_5 {dimension_numbers = #tpu.dot_dimension_numbers<[1], [0], [0], [1], [0, 0, 1, 1], [], []>} : vector<8x32xf32>, vector<32x128xf32>, vector<8x128xf32> -> vector<8x128xf32>
    %cst_6 = arith.constant 5.000000e-01 : f32
    %6 = vector.broadcast %cst_6 : f32 to vector<8x128xf32>
    %7 = arith.mulf %6, %5 : vector<8x128xf32>
    %8 = arith.subf %2, %7 : vector<8x128xf32>
    %c0_7 = arith.constant 0 : index
    %c0_8 = arith.constant 0 : index
    %9 = vector.load %arg3[%c0_7, %c0_8] : memref<8x1xf32, #tpu.memory_space<vmem>>, vector<8x1xf32>
    %10 = vector.broadcast %9 : vector<8x1xf32> to vector<8x128xf32>
    %11 = arith.addf %8, %10 : vector<8x128xf32>
    %c0_9 = arith.constant 0 : index
    %c0_10 = arith.constant 0 : index
    %12 = vector.load %arg4[%c0_9, %c0_10] : memref<8x128xf32, #tpu.memory_space<vmem>>, vector<8x128xf32>
    tpu.vector_store %arg4[%c0_9, %c0_10], %11 {strides = array<i32>} : memref<8x128xf32, #tpu.memory_space<vmem>>, vector<8x128xf32>,
    return
  }
}

</mosaic_0001>

<llo_original>
// kernel: tpu_custom_call.1
$region0: #{tpu_custom_call.1}
  #allocation0 [shape = 'u32[]', space=smem, size = 0x4, offset = 0x4, fixed_abs, tag = 'smem constant byte address 0x4 - core index']
  #allocation1 [shape = 'u32[144,128]{1,0:T(1,128)}', space=vmem, size = 0x12000, scoped, tag = 'internal scratch']
  %s0 = inlined_call_operand.hbm [shape: f32[32,128], index: 0, kind: input, shape index: {}]
  %s1 = inlined_call_operand.vmem [shape: f32[8,32], index: 1, kind: input, shape index: {}]
  %s2 = inlined_call_operand.hbm [shape: f32[8,32], index: 2, kind: input, shape index: {}]
  %s3 = inlined_call_operand.vmem [shape: f32[8,1], index: 3, kind: input, shape index: {}]
  %s4 = inlined_call_operand.hbm [shape: f32[8,128], index: 4, kind: output, shape index: {}]
  %s5 = sld [smem:[#allocation0]]
  $region34: #{tpu_custom_call.1} parent=0
    _
  %s7 = ssub.s32 1, %s5
  %s8 = scalar_select 0, %s7, %s5
  $region1: #{tpu_custom_call.1} parent=0
    #allocation2 [shape = 'u8[16384]{0}', space=vmem, size = 0x4000, scoped, tag = 'input window, operand 0, single buffered']
    #allocation3 [shape = 's32[1]{0}', space=sflag, size = 0x4, scoped, tag = 'scoped memory for tpu_custom_call.1']
    #allocation4 [shape = 's32[1]{0}', space=sflag, size = 0x4, scoped, tag = 'scoped memory for tpu_custom_call.1']
    #allocation5 [shape = 'u8[4096]{0}', space=vmem, size = 0x1000, scoped, tag = 'input window, operand 2, single buffered']
    #allocation6 [shape = 's32[1]{0}', space=sflag, size = 0x4, scoped, tag = 'scoped memory for tpu_custom_call.1']
    #allocation7 [shape = 'u8[4096]{0}', space=vmem, size = 0x1000, scoped, tag = 'output window, operand 0, single buffered']
    %9 = vsyncpa [#allocation3], 0
    %10 = vsyncpa [#allocation6], 0
    %11 = vsyncpa [#allocation4], 0
    // Predicated region
    $region2: #{tpu_custom_call.1} parent=1 // pred_check
      _
    $region3: #{tpu_custom_call.1} parent=1 // pred_check_branch
      %13 = sbr.rel (0) target = $region5
    $region4: #{tpu_custom_call.1} parent=1 // pred_region
      %s15 = ssub.s32 512, 512
      %16 = vsyncadd [#allocation3], %s15
      %s17 = sshll.u32 [#allocation2], 4
      %s18 = int_to_ptr.vmem [resolvable:$true] %s17
      %23 = dma.hbm_to_vmem [thread:$0]  %s0, 512, %s18, [#allocation3], 128, 128, 8
    $region5: #{tpu_custom_call.1} parent=1 // pred_fallthru
      _
    // Predicated region
    $region6: #{tpu_custom_call.1} parent=1 // pred_check
      _
    $region7: #{tpu_custom_call.1} parent=1 // pred_check_branch
      %25 = sbr.rel (0) target = $region9
    $region8: #{tpu_custom_call.1} parent=1 // pred_region
      _
    $region9: #{tpu_custom_call.1} parent=1 // pred_fallthru
      _
    // Predicated region
    $region10: #{tpu_custom_call.1} parent=1 // pred_check
      _
    $region11: #{tpu_custom_call.1} parent=1 // pred_check_branch
      %27 = sbr.rel (0) target = $region13
    $region12: #{tpu_custom_call.1} parent=1 // pred_region
      %s29 = ssub.s32 128, 128
      %30 = vsyncadd [#allocation6], %s29
      %s32 = sshll.u32 [#allocation5], 4
      %s33 = int_to_ptr.vmem [resolvable:$true] %s32
      %35 = dma.hbm_to_vmem [thread:$0]  %s2, 128, %s33, [#allocation6]
    $region13: #{tpu_custom_call.1} parent=1 // pred_fallthru
      _
    // Predicated region
    $region14: #{tpu_custom_call.1} parent=1 // pred_check
      _
    $region15: #{tpu_custom_call.1} parent=1 // pred_check_branch
      %37 = sbr.rel (0) target = $region17
    $region16: #{tpu_custom_call.1} parent=1 // pred_region
      _
    $region17: #{tpu_custom_call.1} parent=1 // pred_fallthru
      _
    // Predicated region
    $region18: #{tpu_custom_call.1} parent=1 // pred_check
      _
    $region19: #{tpu_custom_call.1} parent=1 // pred_check_branch
      %39 = sbr.rel (0) target = $region21
    $region20: #{tpu_custom_call.1} parent=1 // pred_region
      %40 = dma.done [#allocation3], 512
    $region21: #{tpu_custom_call.1} parent=1 // pred_fallthru
      _
    // Predicated region
    $region22: #{tpu_custom_call.1} parent=1 // pred_check
      _
    $region23: #{tpu_custom_call.1} parent=1 // pred_check_branch
      %42 = sbr.rel (0) target = $region25
    $region24: #{tpu_custom_call.1} parent=1 // pred_region
      %43 = dma.done [#allocation6], 128
    $region25: #{tpu_custom_call.1} parent=1 // pred_fallthru
      _
    %v44 = vld [vmem:[#allocation2] sm:$0xff]
    %v45 = vld [vmem:[#allocation2 + $0x8] sm:$0xff]
    %v46 = vld [vmem:[#allocation2 + $0x10] sm:$0xff]
    %v47 = vld [vmem:[#allocation2 + $0x18] sm:$0xff]
    %v48 = vld [vmem:[%s1] sm:$0xff]
    %vm49 = vcmask 261120
    %v51 = vsel %vm49, %v48, 0
    %53 = vmatprep.subr.mxu0 0.0
    %54 = vmatpush1.msra.mxu0 0.0
    %55 = vmatprep.subr.mxu0 0.0
    %56 = vmatpush1.msra.mxu0 0.0
    %57 = vmatprep.subr.mxu0 0.0
    %58 = vmatpush1.msra.mxu0 0.0
    %59 = vmatprep.subr.mxu0 0.0
    %60 = vmatpush1.msra.mxu0 0.0
    %61 = vmatprep.subr.mxu0 0.0
    %62 = vmatpush1.msra.mxu0 0.0
    %63 = vmatprep.subr.mxu0 0.0
    %64 = vmatpush1.msra.mxu0 0.0
    %65 = vmatprep.subr.mxu0 0.0
    %66 = vmatpush1.msra.mxu0 0.0
    %67 = vmatprep.subr.mxu0 0.0
    %68 = vmatpush1.msra.mxu0 0.0
    %69 = vmatprep.subr.mxu0 0.0
    %70 = vmatpush1.msra.mxu0 0.0
    %71 = vmatprep.subr.mxu0 0.0
    %72 = vmatpush1.msra.mxu0 0.0
    %73 = vmatprep.subr.mxu0 0.0
    %74 = vmatpush1.msra.mxu0 0.0
    %75 = vmatprep.subr.mxu0 0.0
    %76 = vmatpush1.msra.mxu0 0.0
    %77 = vmatprep.subr.mxu0 0.0
    %78 = vmatpush1.msra.mxu0 %v47
    %79 = vmatprep.subr.mxu0 0.0
    %80 = vmatpush1.msra.mxu0 %v46
    %81 = vmatprep.subr.mxu0 0.0
    %82 = vmatpush1.msra.mxu0 %v45
    %83 = vmatprep.subr.mxu0 0.0
    %84 = vmatpush1.msra.mxu0 %v44
    %85 = vmatprep.subr.mxu0 0.0
    %86 = vmatpush2.msra.mxu0 0.0
    %87 = vmatprep.subr.mxu0 0.0
    %88 = vmatpush2.msra.mxu0 0.0
    %89 = vmatprep.subr.mxu0 0.0
    %90 = vmatpush2.msra.mxu0 0.0
    %91 = vmatprep.subr.mxu0 0.0
    %92 = vmatpush2.msra.mxu0 0.0
    %93 = vmatprep.subr.mxu0 0.0
    %94 = vmatpush2.msra.mxu0 0.0
    %95 = vmatprep.subr.mxu0 0.0
    %96 = vmatpush2.msra.mxu0 0.0
    %97 = vmatprep.subr.mxu0 0.0
    %98 = vmatpush2.msra.mxu0 0.0
    %99 = vmatprep.subr.mxu0 0.0
    %100 = vmatpush2.msra.mxu0 0.0
    %101 = vmatprep.subr.mxu0 0.0
    %102 = vmatpush2.msra.mxu0 0.0
    %103 = vmatprep.subr.mxu0 0.0
    %104 = vmatpush2.msra.mxu0 0.0
    %105 = vmatprep.subr.mxu0 0.0
    %106 = vmatpush2.msra.mxu0 0.0
    %107 = vmatprep.subr.mxu0 0.0
    %108 = vmatpush2.msra.mxu0 0.0
    %109 = vmatprep.subr.mxu0 0.0
    %110 = vmatpush2.msra.mxu0 0.0
    %111 = vmatprep.subr.mxu0 0.0
    %112 = vmatpush2.msra.mxu0 0.0
    %113 = vmatprep.subr.mxu0 0.0
    %114 = vmatpush2.msra.mxu0 0.0
    %115 = vmatprep.subr.mxu0 0.0
    %116 = vmatpush2.msra.mxu0 0.0
    %117 = vmatprep.mubr.f32.mxu0 0.0
    %118 = vmatmul.mubr.f32.gmra.mxu0 %v51
    %v119 = vpop.f32.mrf.mxu0
    %v120 = vadd.f32 0.0, %v119
    %v121 = vpop.f32.mrf.mxu0
    %122 = vdwg.mxu0
    %v123 = vld [vmem:[#allocation5] sm:$0xff]
    %v124 = vmul.f32 %v44, %v44
    %v125 = vmul.f32 %v45, %v45
    %v126 = vmul.f32 %v46, %v46
    %v127 = vmul.f32 %v47, %v47
    %v129 = vsel %vm49, %v123, 0
    %131 = vmatprep.subr.mxu0 0.0
    %132 = vmatpush1.msra.mxu0 0.0
    %133 = vmatprep.subr.mxu0 0.0
    %134 = vmatpush1.msra.mxu0 0.0
    %135 = vmatprep.subr.mxu0 0.0
    %136 = vmatpush1.msra.mxu0 0.0
    %137 = vmatprep.subr.mxu0 0.0
    %138 = vmatpush1.msra.mxu0 0.0
    %139 = vmatprep.subr.mxu0 0.0
    %140 = vmatpush1.msra.mxu0 0.0
    %141 = vmatprep.subr.mxu0 0.0
    %142 = vmatpush1.msra.mxu0 0.0
    %143 = vmatprep.subr.mxu0 0.0
    %144 = vmatpush1.msra.mxu0 0.0
    %145 = vmatprep.subr.mxu0 0.0
    %146 = vmatpush1.msra.mxu0 0.0
    %147 = vmatprep.subr.mxu0 0.0
    %148 = vmatpush1.msra.mxu0 0.0
    %149 = vmatprep.subr.mxu0 0.0
    %150 = vmatpush1.msra.mxu0 0.0
    %151 = vmatprep.subr.mxu0 0.0
    %152 = vmatpush1.msra.mxu0 0.0
    %153 = vmatprep.subr.mxu0 0.0
    %154 = vmatpush1.msra.mxu0 0.0
    %155 = vmatprep.subr.mxu0 0.0
    %156 = vmatpush1.msra.mxu0 %v127
    %157 = vmatprep.subr.mxu0 0.0
    %158 = vmatpush1.msra.mxu0 %v126
    %159 = vmatprep.subr.mxu0 0.0
    %160 = vmatpush1.msra.mxu0 %v125
    %161 = vmatprep.subr.mxu0 0.0
    %162 = vmatpush1.msra.mxu0 %v124
    %163 = vmatprep.subr.mxu0 0.0
    %164 = vmatpush2.msra.mxu0 0.0
    %165 = vmatprep.subr.mxu0 0.0
    %166 = vmatpush2.msra.mxu0 0.0
    %167 = vmatprep.subr.mxu0 0.0
    %168 = vmatpush2.msra.mxu0 0.0
    %169 = vmatprep.subr.mxu0 0.0
    %170 = vmatpush2.msra.mxu0 0.0
    %171 = vmatprep.subr.mxu0 0.0
    %172 = vmatpush2.msra.mxu0 0.0
    %173 = vmatprep.subr.mxu0 0.0
    %174 = vmatpush2.msra.mxu0 0.0
    %175 = vmatprep.subr.mxu0 0.0
    %176 = vmatpush2.msra.mxu0 0.0
    %177 = vmatprep.subr.mxu0 0.0
    %178 = vmatpush2.msra.mxu0 0.0
    %179 = vmatprep.subr.mxu0 0.0
    %180 = vmatpush2.msra.mxu0 0.0
    %181 = vmatprep.subr.mxu0 0.0
    %182 = vmatpush2.msra.mxu0 0.0
    %183 = vmatprep.subr.mxu0 0.0
    %184 = vmatpush2.msra.mxu0 0.0
    %185 = vmatprep.subr.mxu0 0.0
    %186 = vmatpush2.msra.mxu0 0.0
    %187 = vmatprep.subr.mxu0 0.0
    %188 = vmatpush2.msra.mxu0 0.0
    %189 = vmatprep.subr.mxu0 0.0
    %190 = vmatpush2.msra.mxu0 0.0
    %191 = vmatprep.subr.mxu0 0.0
    %192 = vmatpush2.msra.mxu0 0.0
    %193 = vmatprep.subr.mxu0 0.0
    %194 = vmatpush2.msra.mxu0 0.0
    %195 = vmatprep.mubr.f32.mxu0 0.0
    %196 = vmatmul.mubr.f32.gmra.mxu0 %v129
    %v197 = vpop.f32.mrf.mxu0
    %v198 = vadd.f32 0.0, %v197
    %v199 = vpop.f32.mrf.mxu0
    %200 = vdwg.mxu0
    %v201 = vmul.f32 %v198, 0.5
    %v202 = vsub.f32 %v120, %v201
    %v203 = vld [vmem:[%s3] sm:$0xff]
    %205 = vset.pattern.permute.xlu0 0
    %206 = vperm.xlu0 %205, %v203
    %v207 = vpop.permute.xlu0 %206
    %v209 = vadd.f32 %v202, %v207
    %210 = vst [vmem:[#allocation7] sm:$0xff] %v209
    // Predicated region
    $region26: #{tpu_custom_call.1} parent=1 // pred_check
      _
    $region27: #{tpu_custom_call.1} parent=1 // pred_check_branch
      %212 = sbr.rel (0) target = $region29
    $region28: #{tpu_custom_call.1} parent=1 // pred_region
      %s214 = ssub.s32 128, 128
      %215 = vsyncadd [#allocation4], %s214
      %s217 = sshll.u32 [#allocation7], 4
      %s218 = int_to_ptr.vmem [resolvable:$true] %s217
      %220 = dma.vmem_to_hbm [thread:$0]  %s218, 128, %s4, [#allocation4]
    $region29: #{tpu_custom_call.1} parent=1 // pred_fallthru
      _
    // Predicated region
    $region30: #{tpu_custom_call.1} parent=1 // pred_check
      _
    $region31: #{tpu_custom_call.1} parent=1 // pred_check_branch
      %222 = sbr.rel (0) target = $region33
    $region32: #{tpu_custom_call.1} parent=1 // pred_region
      %223 = dma.done [#allocation4], 128
    $region33: #{tpu_custom_call.1} parent=1 // pred_fallthru
      _
    %224 = vsyncpa [#allocation3], 1
    %225 = vsyncpa [#allocation6], 1
    %226 = vsyncpa [#allocation4], 1

</llo_original>
